<compile_context>
chip_gen: v6e
topology: v6e:2x2x1
jax: 0.10.0
libtpu: 0.0.40
codegen_flags: <defaults>
</compile_context>

<pallas_src>
import functools
import math

import jax
import jax.numpy as jnp
import numpy as np
from jax.experimental import pallas as pl
from jax.experimental.pallas import tpu as pltpu


# ----------------------------------------------------------------------------
# Tiled linear kernel (bf16 MXU operands, fp32 accumulation)
# ----------------------------------------------------------------------------
def _linear_kernel(x_ref, w_ref, b_ref, o_ref):
    x = x_ref[...].astype(jnp.bfloat16)
    w = w_ref[...].astype(jnp.bfloat16)
    acc = jnp.dot(x, w, preferred_element_type=jnp.float32)
    o_ref[...] = (acc + b_ref[...].astype(jnp.float32)).astype(o_ref.dtype)


def pallas_linear(x2d, w_t, b_row, out_dtype=None, tm=None):
    """y = x @ w_t + b with x2d [M, Din], w_t [Din, Dout], b_row [1, Dout]."""
    M, Din = x2d.shape
    Dout = w_t.shape[1]
    if out_dtype is None:
        out_dtype = x2d.dtype
    if tm is None:
        tm = M
        for cand in (512, 256, 128):
            if M % cand == 0 and M > cand:   # prefer >= 2 tiles for pipelining
                tm = cand
                break
    return pl.pallas_call(
        _linear_kernel,
        out_shape=jax.ShapeDtypeStruct((M, Dout), out_dtype),
        grid=(M // tm,),
        in_specs=[
            pl.BlockSpec((tm, Din), lambda i: (i, 0)),
            pl.BlockSpec((Din, Dout), lambda i: (0, 0)),   # weight stays resident
            pl.BlockSpec((1, Dout), lambda i: (0, 0)),
        ],
        out_specs=pl.BlockSpec((tm, Dout), lambda i: (i, 0)),
        compiler_params=pltpu.CompilerParams(dimension_semantics=("parallel",)),
    )(x2d, w_t, b_row)


# ----------------------------------------------------------------------------
# One-time probe of pltpu.roll's strided semantics (robust skew selection)
# ----------------------------------------------------------------------------
_STRIDED_ROLL_OK = None


def _use_strided_roll():
    """Returns True iff pltpu.roll(shift=1, stride=1, stride_axis=0) performs a
    per-row right rotation by (1 + row) (np.roll semantics).  Otherwise the
    attention kernel uses a log2-depth slice/concat skew."""
    global _STRIDED_ROLL_OK
    if _STRIDED_ROLL_OK is None:
        def probe_kernel(x_ref, o_ref):
            o_ref[...] = pltpu.roll(x_ref[...], shift=1, axis=1,
                                    stride=1, stride_axis=0)

        x = np.tile(np.arange(128, dtype=np.float32), (128, 1))
        try:
            y = pl.pallas_call(
                probe_kernel,
                out_shape=jax.ShapeDtypeStruct((128, 128), jnp.float32),
            )(jnp.asarray(x))
            y = np.asarray(jax.block_until_ready(y))
            want = np.stack([np.roll(x[i], i + 1) for i in range(128)])
            # Row 127 (rotation by 128) is guarded separately in the kernel,
            # so only rows 0..126 need to match here.
            _STRIDED_ROLL_OK = bool(np.array_equal(y[:127], want[:127]))
        except Exception:  # lowering not supported -> use fallback skew
            _STRIDED_ROLL_OK = False
    return _STRIDED_ROLL_OK


# ----------------------------------------------------------------------------
# Relative attention kernel
# ----------------------------------------------------------------------------
def _rel_attn_kernel(q_ref, k_ref, v_ref, pe_ref, o_ref, *,
                     seq_len, tq, d_k, use_strided_roll):
    """One (batch, head, query-tile) step of causal relative attention."""
    S = seq_len
    q0 = pl.program_id(2) * tq          # first (global) query row of this tile

    q = q_ref[0]                        # [tq, dk]  bf16
    k = k_ref[0]                        # [S,  dk]  bf16
    v = v_ref[0]                        # [S,  dk]  bf16
    pe = pe_ref[0]                      # [S,  dk]  bf16 (pre-rotated by q0)

    dims = (((1,), (1,)), ((), ()))
    s_cont = jax.lax.dot_general(q, k, dims, preferred_element_type=jnp.float32)
    p_rel = jax.lax.dot_general(q, pe, dims, preferred_element_type=jnp.float32)

    row = jax.lax.broadcasted_iota(jnp.int32, (tq, S), 0)   # local query row
    col = jax.lax.broadcasted_iota(jnp.int32, (tq, S), 1)   # key position

    # _skew on the causal region: s_pos[i, j] = p_rel[i, j - i + S - 1], i.e.
    # rotate row i right by (i + 1).  The query-tile offset q0 was folded into
    # the pre-rotated pe tile, so only the local (row + 1) rotation is applied
    # here.  Values rotated into the j > i region are overwritten by the -1e9
    # mask below, exactly like the reference.
    if use_strided_roll:
        s_pos = pltpu.roll(p_rel, shift=1, axis=1, stride=1, stride_axis=0)
        if tq == S:
            # Last row wants a rotation by S (== identity); guard the wrap.
            s_pos = jnp.where(row == S - 1, p_rel, s_pos)
    else:
        # Fallback: O(log tq) static right-rotations, selected per row bit.
        amount = row + 1
        s_pos = p_rel
        b = 1
        while b <= tq:
            if b % S != 0:              # rotation by S is the identity
                rolled = jnp.concatenate(
                    [s_pos[:, S - b:], s_pos[:, :S - b]], axis=1)
                s_pos = jnp.where((amount & b) != 0, rolled, s_pos)
            b *= 2

    scale = 1.0 / math.sqrt(d_k)
    logits = (s_cont + s_pos) * scale
    logits = jnp.where(col <= q0 + row, logits, -1e9)        # causal mask

    m = jnp.max(logits, axis=-1, keepdims=True)
    e = jnp.exp(logits - m)
    denom = jnp.sum(e, axis=-1, keepdims=True)
    p = e * pl.reciprocal(denom, approx=True)

    out = jnp.dot(p.astype(v.dtype), v, preferred_element_type=jnp.float32)
    o_ref[0] = out.astype(o_ref.dtype)


def rel_attention_core(qkv, pe_tiles, num_heads, tq, out_dtype=jnp.bfloat16):
    """qkv: [N, S, 3E] fused projections (Q | K | V, head-major columns);
    pe_tiles: [S // tq, S, dk] per-query-tile pre-rotated relative embeddings.
    Returns the head-major context [N, S, E]."""
    N, S, E3 = qkv.shape
    E = E3 // 3
    H = num_heads
    dk = E // H
    num_q_tiles = S // tq

    kernel = functools.partial(
        _rel_attn_kernel, seq_len=S, tq=tq, d_k=dk,
        use_strided_roll=_use_strided_roll())

    return pl.pallas_call(
        kernel,
        out_shape=jax.ShapeDtypeStruct((N, S, E), out_dtype),
        grid=(N, H, num_q_tiles),
        in_specs=[
            pl.BlockSpec((1, tq, dk), lambda b, h, qi: (b, qi, h)),        # Q head h
            pl.BlockSpec((1, S, dk), lambda b, h, qi: (b, 0, H + h)),      # K head h
            pl.BlockSpec((1, S, dk), lambda b, h, qi: (b, 0, 2 * H + h)),  # V head h
            pl.BlockSpec((1, S, dk), lambda b, h, qi: (qi, 0, 0)),         # pe tile
        ],
        out_specs=pl.BlockSpec((1, tq, dk), lambda b, h, qi: (b, qi, h)),
        compiler_params=pltpu.CompilerParams(
            dimension_semantics=("parallel", "parallel", "parallel")),
    )(qkv, qkv, qkv, pe_tiles)


# ----------------------------------------------------------------------------
# Module forward (glue in plain JAX, hot path in Pallas)
# ----------------------------------------------------------------------------
def relative_attention_forward(params, query, key, value, key_pe, attn_span):
    N, S, E = query.shape
    H = params["num_heads"]
    assert E % H == 0
    dk = E // H
    assert attn_span == S, "only the attn_span == seq_len branch is implemented"
    assert S % 128 == 0, "seq_len must be a multiple of 128 for this kernel"
    assert dk % 128 == 0, "head dim must be a multiple of 128 (fused head slicing)"
    assert key_pe.shape == (S, dk)

    M = N * S
    compute_dtype = jnp.bfloat16

    # --- fused QKV projection -------------------------------------------------
    wqkv_t = jnp.concatenate(
        [params["wq"], params["wk"], params["wv"]], axis=0).T            # [E, 3E]
    bqkv = jnp.concatenate(
        [params["bq"], params["bk"], params["bv"]]).reshape(1, 3 * E)

    if (query is key) and (key is value):
        # self-attention: one matmul per x tile against the fused [E, 3E] weight
        qkv = pallas_linear(query.reshape(M, E), wqkv_t, bqkv,
                            out_dtype=compute_dtype)
    else:
        # cross-attention: inputs differ, project each with its own weight
        qkv = jnp.concatenate(
            [pallas_linear(x.reshape(M, E), w.T, b.reshape(1, E),
                           out_dtype=compute_dtype)
             for x, w, b in ((query, params["wq"], params["bq"]),
                             (key, params["wk"], params["bk"]),
                             (value, params["wv"], params["bv"]))],
            axis=-1)
    qkv = qkv.reshape(N, S, 3 * E)

    # --- relative attention ----------------------------------------------------
    tq = 256 if (S % 256 == 0) else 128
    num_q_tiles = S // tq
    # Fold the per-query-tile offset q0 = qi*tq into the relative-position table
    # so the kernel only applies the (local row + 1) rotation.
    # TODO(synk): for very long S, replace this small duplication with an
    # in-kernel dynamic rotation of a single pe table.
    pe = key_pe.astype(compute_dtype)
    pe_tiles = jnp.stack(
        [jnp.roll(pe, qi * tq, axis=0) for qi in range(num_q_tiles)], axis=0)

    ctx = rel_attention_core(qkv, pe_tiles, H, tq)            # [N, S, E] bf16

    # --- output projection -----------------------------------------------------
    out = pallas_linear(ctx.reshape(M, E), params["wo"].T,
                        params["bo"].reshape(1, E), out_dtype=query.dtype)
    return out.reshape(N, S, E)


# ----------------------------------------------------------------------------
# Pure-JAX reference (mirrors the PyTorch code, incl. the flatten-pad _skew)
# ----------------------------------------------------------------------------
def _skew_ref(x):
    Nn, S, P = x.shape
    x = jnp.pad(x, ((0, 0), (0, 0), (S - P + 1, 0)))
    x = x.reshape(Nn, -1)
    x = x[:, S:]
    return x.reshape(Nn, S, S)


def reference_forward(params, query, key, value, key_pe, attn_span):
    N, S, E = query.shape
    H = params["num_heads"]
    dk = E // H
    hp = jax.lax.Precision.HIGHEST

    def lin(x, w, b):
        return jnp.einsum("nse,oe->nso", x, w, precision=hp) + b

    def heads(x):
        return x.reshape(N, S, H, dk).transpose(0, 2, 1, 3)

    q = heads(lin(query, params["wq"], params["bq"]))
    k = heads(lin(key, params["wk"], params["bk"]))
    v = heads(lin(value, params["wv"], params["bv"]))

    mask = jnp.tril(jnp.ones((S, S), jnp.float32))[None]
    attn_cont = jnp.einsum("nhqd,nhkd->nhqk", q, k, precision=hp).reshape(N * H, S, S)
    attn_cont = jnp.where(mask == 0, 0.0, attn_cont)
    attn_pos = jnp.einsum("nhqd,pd->nhqp", q, key_pe, precision=hp).reshape(N * H, S, -1)
    attn_pos = _skew_ref(attn_pos)
    attn = (attn_cont + attn_pos) / math.sqrt(dk)
    attn = jnp.where(mask == 0, -1e9, attn)
    attn = jax.nn.softmax(attn, axis=-1).reshape(N, H, S, S)
    x = jnp.einsum("nhqk,nhkd->nhqd", attn, v, precision=hp)
    x = x.transpose(0, 2, 1, 3).reshape(N, S, E)
    return jnp.einsum("nse,oe->nso", x, params["wo"], precision=hp) + params["bo"]


# ----------------------------------------------------------------------------
if __name__ == "__main__":
    N, S, d_model, num_heads = 2, 128, 256, 2
    d_k = d_model // num_heads      # 128 (fills MXU lanes; required by the kernel)
    attn_span = S                   # full-span relative attention

    key = jax.random.PRNGKey(0)
    ks = jax.random.split(key, 12)

    def w_init(k, shape, scale=0.05):
        return (scale * jax.random.normal(k, shape)).astype(jnp.float32)

    params = {
        "num_heads": num_heads,
        "wq": w_init(ks[0], (d_model, d_model)), "bq": w_init(ks[1], (d_model,)),
        "wk": w_init(ks[2], (d_model, d_model)), "bk": w_init(ks[3], (d_model,)),
        "wv": w_init(ks[4], (d_model, d_model)), "bv": w_init(ks[5], (d_model,)),
        "wo": w_init(ks[6], (d_model, d_model)), "bo": w_init(ks[7], (d_model,)),
    }

    # self-attention input (the module's canonical use: query = key = value)
    x = jax.random.normal(ks[8], (N, S, d_model), jnp.float32)
    key_pe = w_init(ks[9], (S, d_k), scale=0.05)   # relative key embeddings [P=S, d_k]

    out = relative_attention_forward(params, x, x, x, key_pe, attn_span)
    out = jax.block_until_ready(out)

    ref = jax.block_until_ready(
        reference_forward(params, x, x, x, key_pe, attn_span))

    np.testing.assert_allclose(np.asarray(out), np.asarray(ref), rtol=1e-2, atol=1e-2)
    print("KERNEL_OK")
</pallas_src>

<mosaic_0001>
module attributes {stable_mosaic.version = 11 : i64} {
  func.func @_linear_kernel(%arg0: i32, %arg1: memref<128x256xf32, #tpu.memory_space<vmem>>, %arg2: memref<256x768xf32, #tpu.memory_space<vmem>>, %arg3: memref<1x768xf32, #tpu.memory_space<vmem>>, %arg4: memref<128x768xbf16, #tpu.memory_space<vmem>>) attributes {dimension_semantics = [#tpu.dimension_semantics<parallel>], iteration_bounds = array<i64: 2>, scalar_prefetch = 0 : i64, scratch_operands = 0 : i64, tpu.core_type = #tpu.core_type<tc>, window_params = [{transform_indices = @transform_0, window_bounds = array<i64: 128, 256>}, {pipeline_mode = #tpu.pipeline_mode<synchronous>, transform_indices = @transform_1, window_bounds = array<i64: 256, 768>}, {pipeline_mode = #tpu.pipeline_mode<synchronous>, transform_indices = @transform_2, window_bounds = array<i64: 1, 768>}, {transform_indices = @transform_3, window_bounds = array<i64: 128, 768>}]} {
    %c0 = arith.constant 0 : index
    %c0_0 = arith.constant 0 : index
    %0 = vector.load %arg1[%c0, %c0_0] : memref<128x256xf32, #tpu.memory_space<vmem>>, vector<128x256xf32>
    %1 = arith.truncf %0 : vector<128x256xf32> to vector<128x256xbf16>
    %c0_1 = arith.constant 0 : index
    %c0_2 = arith.constant 0 : index
    %2 = vector.load %arg2[%c0_1, %c0_2] : memref<256x768xf32, #tpu.memory_space<vmem>>, vector<256x768xf32>
    %3 = arith.truncf %2 : vector<256x768xf32> to vector<256x768xbf16>
    %cst = arith.constant dense<0.000000e+00> : vector<128x768xf32>
    %4 = tpu.matmul %1, %3, %cst {dimension_numbers = #tpu.dot_dimension_numbers<[1], [0], [0], [1], [0, 0, 1, 1], [], []>} : vector<128x256xbf16>, vector<256x768xbf16>, vector<128x768xf32> -> vector<128x768xf32>
    %c0_3 = arith.constant 0 : index
    %c0_4 = arith.constant 0 : index
    %5 = vector.load %arg3[%c0_3, %c0_4] : memref<1x768xf32, #tpu.memory_space<vmem>>, vector<1x768xf32>
    %6 = vector.broadcast %5 : vector<1x768xf32> to vector<128x768xf32>
    %7 = arith.addf %4, %6 : vector<128x768xf32>
    %8 = arith.truncf %7 : vector<128x768xf32> to vector<128x768xbf16>
    %c0_5 = arith.constant 0 : index
    %c0_6 = arith.constant 0 : index
    %9 = vector.load %arg4[%c0_5, %c0_6] : memref<128x768xbf16, #tpu.memory_space<vmem>>, vector<128x768xbf16>
    tpu.vector_store %arg4[%c0_5, %c0_6], %8 {strides = array<i32>} : memref<128x768xbf16, #tpu.memory_space<vmem>>, vector<128x768xbf16>,
    return
  }
  func.func @transform_0(%arg0: i32) -> (i32, i32) {
    %c0_i32 = arith.constant 0 : i32
    %c0_i32_0 = arith.constant 0 : i32
    return %arg0, %c0_i32 : i32, i32
  }
  func.func @transform_1(%arg0: i32) -> (i32, i32) {
    %c0_i32 = arith.constant 0 : i32
    %c0_i32_0 = arith.constant 0 : i32
    %c0_i32_1 = arith.constant 0 : i32
    return %c0_i32, %c0_i32_0 : i32, i32
  }
  func.func @transform_2(%arg0: i32) -> (i32, i32) {
    %c0_i32 = arith.constant 0 : i32
    %c0_i32_0 = arith.constant 0 : i32
    %c0_i32_1 = arith.constant 0 : i32
    return %c0_i32, %c0_i32_0 : i32, i32
  }
  func.func @transform_3(%arg0: i32) -> (i32, i32) {
    %c0_i32 = arith.constant 0 : i32
    %c0_i32_0 = arith.constant 0 : i32
    return %arg0, %c0_i32 : i32, i32
  }
}

</mosaic_0001>

<llo_original>
// kernel: tpu_custom_call.1
$region0: #{tpu_custom_call.1}
  #allocation0 [shape = 'u32[]', space=smem, size = 0x4, offset = 0x4, fixed_abs, tag = 'smem constant byte address 0x4 - core index']
  #allocation1 [shape = 'u32[144,128]{1,0:T(1,128)}', space=vmem, size = 0x12000, scoped, tag = 'internal scratch']
  %s0 = inlined_call_operand.hbm [shape: f32[256,256], index: 0, kind: input, shape index: {}]
  %s1 = inlined_call_operand.hbm [shape: f32[256,768], index: 1, kind: input, shape index: {}]
  %s2 = inlined_call_operand.hbm [shape: f32[1,768], index: 2, kind: input, shape index: {}]
  %s3 = inlined_call_operand.hbm [shape: bf16[256,768], index: 3, kind: output, shape index: {}]
  %s4 = sld [smem:[#allocation0]]
  $region57: #{tpu_custom_call.1} parent=0
    _
  %s6 = ssub.s32 1, %s4
  %s7 = scalar_select 0, %s6, %s4
  $region1: #{tpu_custom_call.1} parent=0
    #allocation2 [shape = 'u8[262144]{0}', space=vmem, size = 0x40000, scoped, tag = 'input window, operand 0']
    #allocation3 [shape = 's32[2]{0}', space=sflag, size = 0x8, scoped, tag = 'scoped memory for tpu_custom_call.1']
    #allocation4 [shape = 's32[2]{0}', space=sflag, size = 0x8, scoped, tag = 'scoped memory for tpu_custom_call.1']
    #allocation5 [shape = 'u8[786432]{0}', space=vmem, size = 0xc0000, scoped, tag = 'input window, operand 1, single buffered']
    #allocation6 [shape = 's32[1]{0}', space=sflag, size = 0x4, scoped, tag = 'scoped memory for tpu_custom_call.1']
    #allocation7 [shape = 'u8[3072]{0}', space=vmem, size = 0xc00, scoped, tag = 'input window, operand 2, single buffered']
    #allocation8 [shape = 'u8[393216]{0}', space=vmem, size = 0x60000, scoped, tag = 'output window, operand 0']
    %8 = vsyncpa [#allocation3], 0
    %s9 = scalar_lea.sflag [#allocation3], 1
    %10 = vsyncpa %s9, 0
    %11 = vsyncpa [#allocation6], 0
    %12 = vsyncpa [#allocation4], 0
    %s13 = scalar_lea.sflag [#allocation4], 1
    %14 = vsyncpa %s13, 0
    loop: start=0, step=1, limit=4
    $region2: #{tpu_custom_call.1} parent=1 // loop_pre_header
      _
    $region3: #{tpu_custom_call.1} parent=1 // loop_header
      %s16 = sphi 0, %s20
      %p17 = scmp.ge.s32.totalorder %s16, 4
      %s26 = sphi 0, %s28
      %s29 = sphi 0, %s26
      %s30 = sphi 0, %s29
      %s46 = sphi 0, %s30
      %s50 = sphi 0, %s50
      %s52 = sphi 0, %s50
      %s53 = sphi 0, %s52
      %s67 = sphi 0, %s53
      %s71 = sphi 0, %s71
      %s73 = sphi 0, %s71
      %s74 = sphi 0, %s73
      %s88 = sphi 0, %s74
      %s94 = sphi 0, %s96
      %s97 = sphi 0, %s94
      %s98 = sphi 0, %s97
      %s114 = sphi 0, %s98
    $region4: #{tpu_custom_call.1} parent=1 // loop_header_branch
      %19 = sbr.rel (%p17) target = $region8
    $region5: #{tpu_custom_call.1} parent=1 // loop_body
      %s21 = ssub.s32 %s16, 1
      %s22 = ssub.s32 %s16, 2
      %s23 = sadd.s32 %s16, 1
      %s24 = ssub.s32 %s16, %s23
      %p25 = scmp.eq.s32.totalorder %s24, 0
      %s27 = sadd.s32 %s26, 1
      %s28 = scalar_select %p25, %s26, %s27
      %p31 = pneg %p25
      %p32 = scmp.eq.s32.totalorder %s16, 1
      %p33 = por %p31, %p32
      %p34 = scmp.ne.s32.totalorder %s26, %s29
      %p35 = scmp.eq.s32.totalorder %s16, 0
      %p36 = por %p34, %p35
      %p37 = scmp.ne.s32.totalorder %s26, %s29
      %p38 = scmp.eq.s32.totalorder %s21, 1
      %p39 = por %p37, %p38
      %p40 = scmp.ne.s32.totalorder %s29, %s30
      %p41 = scmp.eq.s32.totalorder %s21, 0
      %p42 = por %p40, %p41
      %p43 = scmp.ne.s32.totalorder %s29, %s30
      %p44 = scmp.eq.s32.totalorder %s22, 1
      %p45 = por %p43, %p44
      %p47 = scmp.ne.s32.totalorder %s30, %s46
      %p48 = scmp.eq.s32.totalorder %s22, 0
      %p49 = por %p47, %p48
      %s51 = sadd.s32 %s50, 1
      %p54 = scmp.eq.s32.totalorder %s16, 1
      %p55 = scmp.ne.s32.totalorder %s50, %s52
      %p56 = scmp.eq.s32.totalorder %s16, 0
      %p57 = por %p55, %p56
      %p58 = scmp.ne.s32.totalorder %s50, %s52
      %p59 = scmp.eq.s32.totalorder %s21, 1
      %p60 = por %p58, %p59
      %p61 = scmp.ne.s32.totalorder %s52, %s53
      %p62 = scmp.eq.s32.totalorder %s21, 0
      %p63 = por %p61, %p62
      %p64 = scmp.ne.s32.totalorder %s52, %s53
      %p65 = scmp.eq.s32.totalorder %s22, 1
      %p66 = por %p64, %p65
      %p68 = scmp.ne.s32.totalorder %s53, %s67
      %p69 = scmp.eq.s32.totalorder %s22, 0
      %p70 = por %p68, %p69
      %s72 = sadd.s32 %s71, 1
      %p75 = scmp.eq.s32.totalorder %s16, 1
      %p76 = scmp.ne.s32.totalorder %s71, %s73
      %p77 = scmp.eq.s32.totalorder %s16, 0
      %p78 = por %p76, %p77
      %p79 = scmp.ne.s32.totalorder %s71, %s73
      %p80 = scmp.eq.s32.totalorder %s21, 1
      %p81 = por %p79, %p80
      %p82 = scmp.ne.s32.totalorder %s73, %s74
      %p83 = scmp.eq.s32.totalorder %s21, 0
      %p84 = por %p82, %p83
      %p85 = scmp.ne.s32.totalorder %s73, %s74
      %p86 = scmp.eq.s32.totalorder %s22, 1
      %p87 = por %p85, %p86
      %p89 = scmp.ne.s32.totalorder %s74, %s88
      %p90 = scmp.eq.s32.totalorder %s22, 0
      %p91 = por %p89, %p90
      %s92 = ssub.s32 %s16, %s23
      %p93 = scmp.eq.s32.totalorder %s92, 0
      %s95 = sadd.s32 %s94, 1
      %s96 = scalar_select %p93, %s94, %s95
      %p99 = pneg %p93
      %p100 = scmp.eq.s32.totalorder %s16, 1
      %p101 = por %p99, %p100
      %p102 = scmp.ne.s32.totalorder %s94, %s97
      %p103 = scmp.eq.s32.totalorder %s16, 0
      %p104 = por %p102, %p103
      %p105 = scmp.ne.s32.totalorder %s94, %s97
      %p106 = scmp.eq.s32.totalorder %s21, 1
      %p107 = por %p105, %p106
      %p108 = scmp.ne.s32.totalorder %s97, %s98
      %p109 = scmp.eq.s32.totalorder %s21, 0
      %p110 = por %p108, %p109
      %p111 = scmp.ne.s32.totalorder %s97, %s98
      %p112 = scmp.eq.s32.totalorder %s22, 1
      %p113 = por %p111, %p112
      %p115 = scmp.ne.s32.totalorder %s98, %s114
      %p116 = scmp.eq.s32.totalorder %s22, 0
      %p117 = por %p115, %p116
      %p118 = scmp.le.s32.totalorder 1, %s16
      %p119 = scmp.lt.s32.totalorder %s16, 3
      %p120 = pnand %p118, %p119
      %p121 = pneg %p120
      // Predicated region
      $region9: #{tpu_custom_call.1} parent=5 // pred_check
        _
      $region10: #{tpu_custom_call.1} parent=5 // pred_check_branch
        %123 = sbr.rel (%p120) target = $region12
      $region11: #{tpu_custom_call.1} parent=5 // pred_region
        %s124 = ssub.s32 %s16, 1
        // Predicated region
        $region13: #{tpu_custom_call.1} parent=11 // pred_check
          %p125 = pneg %p63
        $region14: #{tpu_custom_call.1} parent=11 // pred_check_branch
          %127 = sbr.rel (%p125) target = $region16
        $region15: #{tpu_custom_call.1} parent=11 // pred_region
          %s129 = ssub.s32 24576, 24576
          %130 = vsyncadd [#allocation6], %s129
          %s131 = sshll.u32 [#allocation5], 4
          %s132 = int_to_ptr.vmem [resolvable:$true] %s131
          %137 = dma.hbm_to_vmem [thread:$0]  %s1, 24576, %s132, [#allocation6], 768, 768, 48
        $region16: #{tpu_custom_call.1} parent=11 // pred_fallthru
          _
        // Predicated region
        $region17: #{tpu_custom_call.1} parent=11 // pred_check
          %p138 = pneg %p84
        $region18: #{tpu_custom_call.1} parent=11 // pred_check_branch
          %140 = sbr.rel (%p138) target = $region20
        $region19: #{tpu_custom_call.1} parent=11 // pred_region
          %s142 = ssub.s32 96, 96
          %143 = vsyncadd [#allocation6], %s142
          %s145 = sshll.u32 [#allocation7], 4
          %s146 = int_to_ptr.vmem [resolvable:$true] %s145
          %148 = dma.hbm_to_vmem [thread:$0]  %s2, 96, %s146, [#allocation6]
        $region20: #{tpu_custom_call.1} parent=11 // pred_fallthru
          _
      $region12: #{tpu_custom_call.1} parent=5 // pred_fallthru
        _
      %p149 = scmp.lt.s32.totalorder %s16, 2
      // Predicated region
      $region21: #{tpu_custom_call.1} parent=5 // pred_check
        %p150 = pneg %p149
      $region22: #{tpu_custom_call.1} parent=5 // pred_check_branch
        %152 = sbr.rel (%p150) target = $region24
      $region23: #{tpu_custom_call.1} parent=5 // pred_region
        // Predicated region
        $region25: #{tpu_custom_call.1} parent=23 // pred_check
          %p153 = pneg %p36
        $region26: #{tpu_custom_call.1} parent=23 // pred_check_branch
          %155 = sbr.rel (%p153) target = $region28
        $region27: #{tpu_custom_call.1} parent=23 // pred_region
          %s156 = sand.u32 %s26, 1
          %s157 = scalar_lea.sflag [#allocation3], %s156
          %s158 = sand.u32 %s26, 1
          %s159 = smul.addr %s158, 256
          %s160 = scalar_lea.vmem [#allocation2], %s159
          %s161 = smul.u32 16, %s16
          %s163 = ssub.s32 4096, 4096
          %164 = vsyncadd %s157, %s163
          %s165 = smul.addr %s161, 2
          %s166 = smul.addr %s165, 128
          %s167 = scalar_lea.hbm %s0, %s166
          %s168 = sshll.u32 %s160, 4
          %s169 = int_to_ptr.vmem [resolvable:$true] %s168
          %174 = dma.hbm_to_vmem [thread:$0]  %s167, 4096, %s169, %s157, 256, 256, 16
        $region28: #{tpu_custom_call.1} parent=23 // pred_fallthru
          _
      $region24: #{tpu_custom_call.1} parent=5 // pred_fallthru
        _
      %p175 = scmp.le.s32.totalorder 1, %s16
      %p176 = scmp.lt.s32.totalorder %s16, 3
      %p177 = pnand %p175, %p176
      %p178 = pneg %p177
      // Predicated region
      $region29: #{tpu_custom_call.1} parent=5 // pred_check
        _
      $region30: #{tpu_custom_call.1} parent=5 // pred_check_branch
        %180 = sbr.rel (%p177) target = $region32
      $region31: #{tpu_custom_call.1} parent=5 // pred_region
        %s181 = ssub.s32 %s16, 1
        %s182 = sand.u32 %s29, 1
        %s183 = scalar_lea.sflag [#allocation3], %s182
        %s184 = sand.u32 %s29, 1
        %s185 = smul.addr %s184, 256
        %s186 = scalar_lea.vmem [#allocation2], %s185
        // Predicated region
        $region33: #{tpu_custom_call.1} parent=31 // pred_check
          %p187 = pneg %p42
        $region34: #{tpu_custom_call.1} parent=31 // pred_check_branch
          %189 = sbr.rel (%p187) target = $region36
        $region35: #{tpu_custom_call.1} parent=31 // pred_region
          %190 = dma.done %s183, 4096
        $region36: #{tpu_custom_call.1} parent=31 // pred_fallthru
          _
        // Predicated region
        $region37: #{tpu_custom_call.1} parent=31 // pred_check
          %p191 = pneg %p63
        $region38: #{tpu_custom_call.1} parent=31 // pred_check_branch
          %193 = sbr.rel (%p191) target = $region40
        $region39: #{tpu_custom_call.1} parent=31 // pred_region
          %194 = dma.done [#allocation6], 24576
        $region40: #{tpu_custom_call.1} parent=31 // pred_fallthru
          _
        // Predicated region
        $region41: #{tpu_custom_call.1} parent=31 // pred_check
          %p195 = pneg %p84
        $region42: #{tpu_custom_call.1} parent=31 // pred_check_branch
          %197 = sbr.rel (%p195) target = $region44
        $region43: #{tpu_custom_call.1} parent=31 // pred_region
          %198 = dma.done [#allocation6], 96
        $region44: #{tpu_custom_call.1} parent=31 // pred_fallthru
          _
        %s199 = sand.u32 %s29, 1
        %s200 = scalar_lea.sflag [#allocation3], %s199
        %s201 = sand.u32 %s29, 1
        %s202 = smul.addr %s201, 256
        %s203 = scalar_lea.vmem [#allocation2], %s202
        %p204 = pneg %p42
        %p205 = pneg %p39
        %p206 = pneg %p63
        %p207 = pneg %p60
        %p208 = pneg %p84
        %p209 = pneg %p81
        %p210 = pneg %p110
        %p211 = pneg %p107
        %s212 = sand.u32 %s97, 1
        %s213 = scalar_lea.sflag [#allocation4], %s212
        %s214 = sand.u32 %s97, 1
        %s215 = smul.addr %s214, 384
        %s216 = scalar_lea.vmem [#allocation8], %s215
        %s217 = smul.u32 16, %s21
        %s218 = smul.u32 16, %s21
        %v219 = vld [vmem:[%s186] sm:$0xff]
        %v220 = vld [vmem:[%s186 + $0x8] sm:$0xff]
        %v221 = vld [vmem:[%s186 + $0x10] sm:$0xff]
        %v222 = vld [vmem:[%s186 + $0x18] sm:$0xff]
        %v223 = vld [vmem:[%s186 + $0x20] sm:$0xff]
        %v224 = vld [vmem:[%s186 + $0x28] sm:$0xff]
        %v225 = vld [vmem:[%s186 + $0x30] sm:$0xff]
        %v226 = vld [vmem:[%s186 + $0x38] sm:$0xff]
        %v227 = vld [vmem:[%s186 + $0x40] sm:$0xff]
        %v228 = vld [vmem:[%s186 + $0x48] sm:$0xff]
        %v229 = vld [vmem:[%s186 + $0x50] sm:$0xff]
        %v230 = vld [vmem:[%s186 + $0x58] sm:$0xff]
        %v231 = vld [vmem:[%s186 + $0x60] sm:$0xff]
        %v232 = vld [vmem:[%s186 + $0x68] sm:$0xff]
        %v233 = vld [vmem:[%s186 + $0x70] sm:$0xff]
        %v234 = vld [vmem:[%s186 + $0x78] sm:$0xff]
        %v235 = vld [vmem:[%s186 + $0x80] sm:$0xff]
        %v236 = vld [vmem:[%s186 + $0x88] sm:$0xff]
        %v237 = vld [vmem:[%s186 + $0x90] sm:$0xff]
        %v238 = vld [vmem:[%s186 + $0x98] sm:$0xff]
        %v239 = vld [vmem:[%s186 + $0xa0] sm:$0xff]
        %v240 = vld [vmem:[%s186 + $0xa8] sm:$0xff]
        %v241 = vld [vmem:[%s186 + $0xb0] sm:$0xff]
        %v242 = vld [vmem:[%s186 + $0xb8] sm:$0xff]
        %v243 = vld [vmem:[%s186 + $0xc0] sm:$0xff]
        %v244 = vld [vmem:[%s186 + $0xc8] sm:$0xff]
        %v245 = vld [vmem:[%s186 + $0xd0] sm:$0xff]
        %v246 = vld [vmem:[%s186 + $0xd8] sm:$0xff]
        %v247 = vld [vmem:[%s186 + $0xe0] sm:$0xff]
        %v248 = vld [vmem:[%s186 + $0xe8] sm:$0xff]
        %v249 = vld [vmem:[%s186 + $0xf0] sm:$0xff]
        %v250 = vld [vmem:[%s186 + $0xf8] sm:$0xff]
        %v251 = vpack.c.bf16 %v221, %v219
        %v252 = vpack.c.bf16 %v222, %v220
        %v253 = vpack.c.bf16 %v225, %v223
        %v254 = vpack.c.bf16 %v226, %v224
        %v255 = vpack.c.bf16 %v229, %v227
        %v256 = vpack.c.bf16 %v230, %v228
        %v257 = vpack.c.bf16 %v233, %v231
        %v258 = vpack.c.bf16 %v234, %v232
        %v259 = vpack.c.bf16 %v237, %v235
        %v260 = vpack.c.bf16 %v238, %v236
        %v261 = vpack.c.bf16 %v241, %v239
        %v262 = vpack.c.bf16 %v242, %v240
        %v263 = vpack.c.bf16 %v245, %v243
        %v264 = vpack.c.bf16 %v246, %v244
        %v265 = vpack.c.bf16 %v249, %v247
        %v266 = vpack.c.bf16 %v250, %v248
        %v267 = vld [vmem:[#allocation5] sm:$0xff]
        %v268 = vld [vmem:[#allocation5 + $0x8] sm:$0xff]
        %v269 = vld [vmem:[#allocation5 + $0x10] sm:$0xff]
        %v270 = vld [vmem:[#allocation5 + $0x18] sm:$0xff]
        %v271 = vld [vmem:[#allocation5 + $0x20] sm:$0xff]
        %v272 = vld [vmem:[#allocation5 + $0x28] sm:$0xff]
        %v273 = vld [vmem:[#allocation5 + $0x30] sm:$0xff]
        %v274 = vld [vmem:[#allocation5 + $0x38] sm:$0xff]
        %v275 = vld [vmem:[#allocation5 + $0x40] sm:$0xff]
        %v276 = vld [vmem:[#allocation5 + $0x48] sm:$0xff]
        %v277 = vld [vmem:[#allocation5 + $0x50] sm:$0xff]
        %v278 = vld [vmem:[#allocation5 + $0x58] sm:$0xff]
        %v279 = vld [vmem:[#allocation5 + $0x60] sm:$0xff]
        %v280 = vld [vmem:[#allocation5 + $0x68] sm:$0xff]
        %v281 = vld [vmem:[#allocation5 + $0x70] sm:$0xff]
        %v282 = vld [vmem:[#allocation5 + $0x78] sm:$0xff]
        %v283 = vld [vmem:[#allocation5 + $0x80] sm:$0xff]
        %v284 = vld [vmem:[#allocation5 + $0x88] sm:$0xff]
        %v285 = vld [vmem:[#allocation5 + $0x90] sm:$0xff]
        %v286 = vld [vmem:[#allocation5 + $0x98] sm:$0xff]
        %v287 = vld [vmem:[#allocation5 + $0xa0] sm:$0xff]
        %v288 = vld [vmem:[#allocation5 + $0xa8] sm:$0xff]
        %v289 = vld [vmem:[#allocation5 + $0xb0] sm:$0xff]
        %v290 = vld [vmem:[#allocation5 + $0xb8] sm:$0xff]
        %v291 = vld [vmem:[#allocation5 + $0xc0] sm:$0xff]
        %v292 = vld [vmem:[#allocation5 + $0xc8] sm:$0xff]
        %v293 = vld [vmem:[#allocation5 + $0xd0] sm:$0xff]
        %v294 = vld [vmem:[#allocation5 + $0xd8] sm:$0xff]
        %v295 = vld [vmem:[#allocation5 + $0xe0] sm:$0xff]
        %v296 = vld [vmem:[#allocation5 + $0xe8] sm:$0xff]
        %v297 = vld [vmem:[#allocation5 + $0xf0] sm:$0xff]
        %v298 = vld [vmem:[#allocation5 + $0xf8] sm:$0xff]
        %v299 = vld [vmem:[#allocation5 + $0x100] sm:$0xff]
        %v300 = vld [vmem:[#allocation5 + $0x108] sm:$0xff]
        %v301 = vld [vmem:[#allocation5 + $0x110] sm:$0xff]
        %v302 = vld [vmem:[#allocation5 + $0x118] sm:$0xff]
        %v303 = vld [vmem:[#allocation5 + $0x120] sm:$0xff]
        %v304 = vld [vmem:[#allocation5 + $0x128] sm:$0xff]
        %v305 = vld [vmem:[#allocation5 + $0x130] sm:$0xff]
        %v306 = vld [vmem:[#allocation5 + $0x138] sm:$0xff]
        %v307 = vld [vmem:[#allocation5 + $0x140] sm:$0xff]
        %v308 = vld [vmem:[#allocation5 + $0x148] sm:$0xff]
        %v309 = vld [vmem:[#allocation5 + $0x150] sm:$0xff]
        %v310 = vld [vmem:[#allocation5 + $0x158] sm:$0xff]
        %v311 = vld [vmem:[#allocation5 + $0x160] sm:$0xff]
        %v312 = vld [vmem:[#allocation5 + $0x168] sm:$0xff]
        %v313 = vld [vmem:[#allocation5 + $0x170] sm:$0xff]
        %v314 = vld [vmem:[#allocation5 + $0x178] sm:$0xff]
        %v315 = vld [vmem:[#allocation5 + $0x180] sm:$0xff]
        %v316 = vld [vmem:[#allocation5 + $0x188] sm:$0xff]
        %v317 = vld [vmem:[#allocation5 + $0x190] sm:$0xff]
        %v318 = vld [vmem:[#allocation5 + $0x198] sm:$0xff]
        %v319 = vld [vmem:[#allocation5 + $0x1a0] sm:$0xff]
        %v320 = vld [vmem:[#allocation5 + $0x1a8] sm:$0xff]
        %v321 = vld [vmem:[#allocation5 + $0x1b0] sm:$0xff]
        %v322 = vld [vmem:[#allocation5 + $0x1b8] sm:$0xff]
        %v323 = vld [vmem:[#allocation5 + $0x1c0] sm:$0xff]
        %v324 = vld [vmem:[#allocation5 + $0x1c8] sm:$0xff]
        %v325 = vld [vmem:[#allocation5 + $0x1d0] sm:$0xff]
        %v326 = vld [vmem:[#allocation5 + $0x1d8] sm:$0xff]
        %v327 = vld [vmem:[#allocation5 + $0x1e0] sm:$0xff]
        %v328 = vld [vmem:[#allocation5 + $0x1e8] sm:$0xff]
        %v329 = vld [vmem:[#allocation5 + $0x1f0] sm:$0xff]
        %v330 = vld [vmem:[#allocation5 + $0x1f8] sm:$0xff]
        %v331 = vld [vmem:[#allocation5 + $0x200] sm:$0xff]
        %v332 = vld [vmem:[#allocation5 + $0x208] sm:$0xff]
        %v333 = vld [vmem:[#allocation5 + $0x210] sm:$0xff]
        %v334 = vld [vmem:[#allocation5 + $0x218] sm:$0xff]
        %v335 = vld [vmem:[#allocation5 + $0x220] sm:$0xff]
        %v336 = vld [vmem:[#allocation5 + $0x228] sm:$0xff]
        %v337 = vld [vmem:[#allocation5 + $0x230] sm:$0xff]
        %v338 = vld [vmem:[#allocation5 + $0x238] sm:$0xff]
        %v339 = vld [vmem:[#allocation5 + $0x240] sm:$0xff]
        %v340 = vld [vmem:[#allocation5 + $0x248] sm:$0xff]
        %v341 = vld [vmem:[#allocation5 + $0x250] sm:$0xff]
        %v342 = vld [vmem:[#allocation5 + $0x258] sm:$0xff]
        %v343 = vld [vmem:[#allocation5 + $0x260] sm:$0xff]
        %v344 = vld [vmem:[#allocation5 + $0x268] sm:$0xff]
        %v345 = vld [vmem:[#allocation5 + $0x270] sm:$0xff]
        %v346 = vld [vmem:[#allocation5 + $0x278] sm:$0xff]
        %v347 = vld [vmem:[#allocation5 + $0x280] sm:$0xff]
        %v348 = vld [vmem:[#allocation5 + $0x288] sm:$0xff]
        %v349 = vld [vmem:[#allocation5 + $0x290] sm:$0xff]
        %v350 = vld [vmem:[#allocation5 + $0x298] sm:$0xff]
        %v351 = vld [vmem:[#allocation5 + $0x2a0] sm:$0xff]
        %v352 = vld [vmem:[#allocation5 + $0x2a8] sm:$0xff]
        %v353 = vld [vmem:[#allocation5 + $0x2b0] sm:$0xff]
        %v354 = vld [vmem:[#allocation5 + $0x2b8] sm:$0xff]
        %v355 = vld [vmem:[#allocation5 + $0x2c0] sm:$0xff]
        %v356 = vld [vmem:[#allocation5 + $0x2c8] sm:$0xff]
        %v357 = vld [vmem:[#allocation5 + $0x2d0] sm:$0xff]
        %v358 = vld [vmem:[#allocation5 + $0x2d8] sm:$0xff]
        %v359 = vld [vmem:[#allocation5 + $0x2e0] sm:$0xff]
        %v360 = vld [vmem:[#allocation5 + $0x2e8] sm:$0xff]
        %v361 = vld [vmem:[#allocation5 + $0x2f0] sm:$0xff]
        %v362 = vld [vmem:[#allocation5 + $0x2f8] sm:$0xff]
        %v363 = vld [vmem:[#allocation5 + $0x300] sm:$0xff]
        %v364 = vld [vmem:[#allocation5 + $0x308] sm:$0xff]
        %v365 = vld [vmem:[#allocation5 + $0x310] sm:$0xff]
        %v366 = vld [vmem:[#allocation5 + $0x318] sm:$0xff]
        %v367 = vld [vmem:[#allocation5 + $0x320] sm:$0xff]
        %v368 = vld [vmem:[#allocation5 + $0x328] sm:$0xff]
        %v369 = vld [vmem:[#allocation5 + $0x330] sm:$0xff]
        %v370 = vld [vmem:[#allocation5 + $0x338] sm:$0xff]
        %v371 = vld [vmem:[#allocation5 + $0x340] sm:$0xff]
        %v372 = vld [vmem:[#allocation5 + $0x348] sm:$0xff]
        %v373 = vld [vmem:[#allocation5 + $0x350] sm:$0xff]
        %v374 = vld [vmem:[#allocation5 + $0x358] sm:$0xff]
        %v375 = vld [vmem:[#allocation5 + $0x360] sm:$0xff]
        %v376 = vld [vmem:[#allocation5 + $0x368] sm:$0xff]
        %v377 = vld [vmem:[#allocation5 + $0x370] sm:$0xff]
        %v378 = vld [vmem:[#allocation5 + $0x378] sm:$0xff]
        %v379 = vld [vmem:[#allocation5 + $0x380] sm:$0xff]
        %v380 = vld [vmem:[#allocation5 + $0x388] sm:$0xff]
        %v381 = vld [vmem:[#allocation5 + $0x390] sm:$0xff]
        %v382 = vld [vmem:[#allocation5 + $0x398] sm:$0xff]
        %v383 = vld [vmem:[#allocation5 + $0x3a0] sm:$0xff]
        %v384 = vld [vmem:[#allocation5 + $0x3a8] sm:$0xff]
        %v385 = vld [vmem:[#allocation5 + $0x3b0] sm:$0xff]
        %v386 = vld [vmem:[#allocation5 + $0x3b8] sm:$0xff]
        %v387 = vld [vmem:[#allocation5 + $0x3c0] sm:$0xff]
        %v388 = vld [vmem:[#allocation5 + $0x3c8] sm:$0xff]
        %v389 = vld [vmem:[#allocation5 + $0x3d0] sm:$0xff]
        %v390 = vld [vmem:[#allocation5 + $0x3d8] sm:$0xff]
        %v391 = vld [vmem:[#allocation5 + $0x3e0] sm:$0xff]
        %v392 = vld [vmem:[#allocation5 + $0x3e8] sm:$0xff]
        %v393 = vld [vmem:[#allocation5 + $0x3f0] sm:$0xff]
        %v394 = vld [vmem:[#allocation5 + $0x3f8] sm:$0xff]
        %v395 = vld [vmem:[#allocation5 + $0x400] sm:$0xff]
        %v396 = vld [vmem:[#allocation5 + $0x408] sm:$0xff]
        %v397 = vld [vmem:[#allocation5 + $0x410] sm:$0xff]
        %v398 = vld [vmem:[#allocation5 + $0x418] sm:$0xff]
        %v399 = vld [vmem:[#allocation5 + $0x420] sm:$0xff]
        %v400 = vld [vmem:[#allocation5 + $0x428] sm:$0xff]
        %v401 = vld [vmem:[#allocation5 + $0x430] sm:$0xff]
        %v402 = vld [vmem:[#allocation5 + $0x438] sm:$0xff]
        %v403 = vld [vmem:[#allocation5 + $0x440] sm:$0xff]
        %v404 = vld [vmem:[#allocation5 + $0x448] sm:$0xff]
        %v405 = vld [vmem:[#allocation5 + $0x450] sm:$0xff]
        %v406 = vld [vmem:[#allocation5 + $0x458] sm:$0xff]
        %v407 = vld [vmem:[#allocation5 + $0x460] sm:$0xff]
        %v408 = vld [vmem:[#allocation5 + $0x468] sm:$0xff]
        %v409 = vld [vmem:[#allocation5 + $0x470] sm:$0xff]
        %v410 = vld [vmem:[#allocation5 + $0x478] sm:$0xff]
        %v411 = vld [vmem:[#allocation5 + $0x480] sm:$0xff]
        %v412 = vld [vmem:[#allocation5 + $0x488] sm:$0xff]
        %v413 = vld [vmem:[#allocation5 + $0x490] sm:$0xff]
        %v414 = vld [vmem:[#allocation5 + $0x498] sm:$0xff]
        %v415 = vld [vmem:[#allocation5 + $0x4a0] sm:$0xff]
        %v416 = vld [vmem:[#allocation5 + $0x4a8] sm:$0xff]
        %v417 = vld [vmem:[#allocation5 + $0x4b0] sm:$0xff]
        %v418 = vld [vmem:[#allocation5 + $0x4b8] sm:$0xff]
        %v419 = vld [vmem:[#allocation5 + $0x4c0] sm:$0xff]
        %v420 = vld [vmem:[#allocation5 + $0x4c8] sm:$0xff]
        %v421 = vld [vmem:[#allocation5 + $0x4d0] sm:$0xff]
        %v422 = vld [vmem:[#allocation5 + $0x4d8] sm:$0xff]
        %v423 = vld [vmem:[#allocation5 + $0x4e0] sm:$0xff]
        %v424 = vld [vmem:[#allocation5 + $0x4e8] sm:$0xff]
        %v425 = vld [vmem:[#allocation5 + $0x4f0] sm:$0xff]
        %v426 = vld [vmem:[#allocation5 + $0x4f8] sm:$0xff]
        %v427 = vld [vmem:[#allocation5 + $0x500] sm:$0xff]
        %v428 = vld [vmem:[#allocation5 + $0x508] sm:$0xff]
        %v429 = vld [vmem:[#allocation5 + $0x510] sm:$0xff]
        %v430 = vld [vmem:[#allocation5 + $0x518] sm:$0xff]
        %v431 = vld [vmem:[#allocation5 + $0x520] sm:$0xff]
        %v432 = vld [vmem:[#allocation5 + $0x528] sm:$0xff]
        %v433 = vld [vmem:[#allocation5 + $0x530] sm:$0xff]
        %v434 = vld [vmem:[#allocation5 + $0x538] sm:$0xff]
        %v435 = vld [vmem:[#allocation5 + $0x540] sm:$0xff]
        %v436 = vld [vmem:[#allocation5 + $0x548] sm:$0xff]
        %v437 = vld [vmem:[#allocation5 + $0x550] sm:$0xff]
        %v438 = vld [vmem:[#allocation5 + $0x558] sm:$0xff]
        %v439 = vld [vmem:[#allocation5 + $0x560] sm:$0xff]
        %v440 = vld [vmem:[#allocation5 + $0x568] sm:$0xff]
        %v441 = vld [vmem:[#allocation5 + $0x570] sm:$0xff]
        %v442 = vld [vmem:[#allocation5 + $0x578] sm:$0xff]
        %v443 = vld [vmem:[#allocation5 + $0x580] sm:$0xff]
        %v444 = vld [vmem:[#allocation5 + $0x588] sm:$0xff]
        %v445 = vld [vmem:[#allocation5 + $0x590] sm:$0xff]
        %v446 = vld [vmem:[#allocation5 + $0x598] sm:$0xff]
        %v447 = vld [vmem:[#allocation5 + $0x5a0] sm:$0xff]
        %v448 = vld [vmem:[#allocation5 + $0x5a8] sm:$0xff]
        %v449 = vld [vmem:[#allocation5 + $0x5b0] sm:$0xff]
        %v450 = vld [vmem:[#allocation5 + $0x5b8] sm:$0xff]
        %v451 = vld [vmem:[#allocation5 + $0x5c0] sm:$0xff]
        %v452 = vld [vmem:[#allocation5 + $0x5c8] sm:$0xff]
        %v453 = vld [vmem:[#allocation5 + $0x5d0] sm:$0xff]
        %v454 = vld [vmem:[#allocation5 + $0x5d8] sm:$0xff]
        %v455 = vld [vmem:[#allocation5 + $0x5e0] sm:$0xff]
        %v456 = vld [vmem:[#allocation5 + $0x5e8] sm:$0xff]
        %v457 = vld [vmem:[#allocation5 + $0x5f0] sm:$0xff]
        %v458 = vld [vmem:[#allocation5 + $0x5f8] sm:$0xff]
        %v459 = vpack.c.bf16 %v273, %v267
        %v460 = vpack.c.bf16 %v274, %v268
        %v461 = vpack.c.bf16 %v275, %v269
        %v462 = vpack.c.bf16 %v276, %v270
        %v463 = vpack.c.bf16 %v277, %v271
        %v464 = vpack.c.bf16 %v278, %v272
        %v465 = vpack.c.bf16 %v285, %v279
        %v466 = vpack.c.bf16 %v286, %v280
        %v467 = vpack.c.bf16 %v287, %v281
        %v468 = vpack.c.bf16 %v288, %v282
        %v469 = vpack.c.bf16 %v289, %v283
        %v470 = vpack.c.bf16 %v290, %v284
        %v471 = vpack.c.bf16 %v297, %v291
        %v472 = vpack.c.bf16 %v298, %v292
        %v473 = vpack.c.bf16 %v299, %v293
        %v474 = vpack.c.bf16 %v300, %v294
        %v475 = vpack.c.bf16 %v301, %v295
        %v476 = vpack.c.bf16 %v302, %v296
        %v477 = vpack.c.bf16 %v309, %v303
        %v478 = vpack.c.bf16 %v310, %v304
        %v479 = vpack.c.bf16 %v311, %v305
        %v480 = vpack.c.bf16 %v312, %v306
        %v481 = vpack.c.bf16 %v313, %v307
        %v482 = vpack.c.bf16 %v314, %v308
        %v483 = vpack.c.bf16 %v321, %v315
        %v484 = vpack.c.bf16 %v322, %v316
        %v485 = vpack.c.bf16 %v323, %v317
        %v486 = vpack.c.bf16 %v324, %v318
        %v487 = vpack.c.bf16 %v325, %v319
        %v488 = vpack.c.bf16 %v326, %v320
        %v489 = vpack.c.bf16 %v333, %v327
        %v490 = vpack.c.bf16 %v334, %v328
        %v491 = vpack.c.bf16 %v335, %v329
        %v492 = vpack.c.bf16 %v336, %v330
        %v493 = vpack.c.bf16 %v337, %v331
        %v494 = vpack.c.bf16 %v338, %v332
        %v495 = vpack.c.bf16 %v345, %v339
        %v496 = vpack.c.bf16 %v346, %v340
        %v497 = vpack.c.bf16 %v347, %v341
        %v498 = vpack.c.bf16 %v348, %v342
        %v499 = vpack.c.bf16 %v349, %v343
        %v500 = vpack.c.bf16 %v350, %v344
        %v501 = vpack.c.bf16 %v357, %v351
        %v502 = vpack.c.bf16 %v358, %v352
        %v503 = vpack.c.bf16 %v359, %v353
        %v504 = vpack.c.bf16 %v360, %v354
        %v505 = vpack.c.bf16 %v361, %v355
        %v506 = vpack.c.bf16 %v362, %v356
        %v507 = vpack.c.bf16 %v369, %v363
        %v508 = vpack.c.bf16 %v370, %v364
        %v509 = vpack.c.bf16 %v371, %v365
        %v510 = vpack.c.bf16 %v372, %v366
        %v511 = vpack.c.bf16 %v373, %v367
        %v512 = vpack.c.bf16 %v374, %v368
        %v513 = vpack.c.bf16 %v381, %v375
        %v514 = vpack.c.bf16 %v382, %v376
        %v515 = vpack.c.bf16 %v383, %v377
        %v516 = vpack.c.bf16 %v384, %v378
        %v517 = vpack.c.bf16 %v385, %v379
        %v518 = vpack.c.bf16 %v386, %v380
        %v519 = vpack.c.bf16 %v393, %v387
        %v520 = vpack.c.bf16 %v394, %v388
        %v521 = vpack.c.bf16 %v395, %v389
        %v522 = vpack.c.bf16 %v396, %v390
        %v523 = vpack.c.bf16 %v397, %v391
        %v524 = vpack.c.bf16 %v398, %v392
        %v525 = vpack.c.bf16 %v405, %v399
        %v526 = vpack.c.bf16 %v406, %v400
        %v527 = vpack.c.bf16 %v407, %v401
        %v528 = vpack.c.bf16 %v408, %v402
        %v529 = vpack.c.bf16 %v409, %v403
        %v530 = vpack.c.bf16 %v410, %v404
        %v531 = vpack.c.bf16 %v417, %v411
        %v532 = vpack.c.bf16 %v418, %v412
        %v533 = vpack.c.bf16 %v419, %v413
        %v534 = vpack.c.bf16 %v420, %v414
        %v535 = vpack.c.bf16 %v421, %v415
        %v536 = vpack.c.bf16 %v422, %v416
        %v537 = vpack.c.bf16 %v429, %v423
        %v538 = vpack.c.bf16 %v430, %v424
        %v539 = vpack.c.bf16 %v431, %v425
        %v540 = vpack.c.bf16 %v432, %v426
        %v541 = vpack.c.bf16 %v433, %v427
        %v542 = vpack.c.bf16 %v434, %v428
        %v543 = vpack.c.bf16 %v441, %v435
        %v544 = vpack.c.bf16 %v442, %v436
        %v545 = vpack.c.bf16 %v443, %v437
        %v546 = vpack.c.bf16 %v444, %v438
        %v547 = vpack.c.bf16 %v445, %v439
        %v548 = vpack.c.bf16 %v446, %v440
        %v549 = vpack.c.bf16 %v453, %v447
        %v550 = vpack.c.bf16 %v454, %v448
        %v551 = vpack.c.bf16 %v455, %v449
        %v552 = vpack.c.bf16 %v456, %v450
        %v553 = vpack.c.bf16 %v457, %v451
        %v554 = vpack.c.bf16 %v458, %v452
        %v555 = vld [vmem:[#allocation7] sm:$0x3f]
        %v557 = vlaneseq
        %v558 = vshrl.u32 %v557, 7
        %v559 = vsub.s32 0, %v558
        %v560 = vrot.slane %v555, %v559
        %v561 = vlaneseq
        %v562 = vshrl.u32 %v561, 7
        %v563 = vsub.s32 1, %v562
        %v564 = vrot.slane %v555, %v563
        %v565 = vlaneseq
        %v566 = vshrl.u32 %v565, 7
        %v567 = vsub.s32 2, %v566
        %v568 = vrot.slane %v555, %v567
        %v569 = vlaneseq
        %v570 = vshrl.u32 %v569, 7
        %v571 = vsub.s32 3, %v570
        %v572 = vrot.slane %v555, %v571
        %v573 = vlaneseq
        %v574 = vshrl.u32 %v573, 7
        %v575 = vsub.s32 4, %v574
        %v576 = vrot.slane %v555, %v575
        %v577 = vlaneseq
        %v578 = vshrl.u32 %v577, 7
        %v579 = vsub.s32 5, %v578
        %v580 = vrot.slane %v555, %v579
        %587 = vmatprep.subr.bf16.mxu0 %v502
        %588 = vmatpush1.bf16.msra.mxu0 %v501
        %589 = vmatprep.subr.bf16.mxu0 %v496
        %590 = vmatpush1.bf16.msra.mxu0 %v495
        %591 = vmatprep.subr.bf16.mxu0 %v490
        %592 = vmatpush1.bf16.msra.mxu0 %v489
        %593 = vmatprep.subr.bf16.mxu0 %v484
        %594 = vmatpush1.bf16.msra.mxu0 %v483
        %595 = vmatprep.subr.bf16.mxu0 %v478
        %596 = vmatpush1.bf16.msra.mxu0 %v477
        %597 = vmatprep.subr.bf16.mxu0 %v472
        %598 = vmatpush1.bf16.msra.mxu0 %v471
        %599 = vmatprep.subr.bf16.mxu0 %v466
        %600 = vmatpush1.bf16.msra.mxu0 %v465
        %601 = vmatprep.subr.bf16.mxu0 %v460
        %602 = vmatpush1.bf16.msra.mxu0 %v459
        %603 = vmatprep.subr.bf16.mxu0 %v550
        %604 = vmatpush2.bf16.msra.mxu0 %v549
        %605 = vmatprep.subr.bf16.mxu0 %v544
        %606 = vmatpush2.bf16.msra.mxu0 %v543
        %607 = vmatprep.subr.bf16.mxu0 %v538
        %608 = vmatpush2.bf16.msra.mxu0 %v537
        %609 = vmatprep.subr.bf16.mxu0 %v532
        %610 = vmatpush2.bf16.msra.mxu0 %v531
        %611 = vmatprep.subr.bf16.mxu0 %v526
        %612 = vmatpush2.bf16.msra.mxu0 %v525
        %613 = vmatprep.subr.bf16.mxu0 %v520
        %614 = vmatpush2.bf16.msra.mxu0 %v519
        %615 = vmatprep.subr.bf16.mxu0 %v514
        %616 = vmatpush2.bf16.msra.mxu0 %v513
        %617 = vmatprep.subr.bf16.mxu0 %v508
        %618 = vmatpush2.bf16.msra.mxu0 %v507
        %619 = vmatprep.mubr.bf16.mxu0 %v252
        %620 = vmatmul.mubr.bf16.gmra.mxu0 %v251
        %v621 = vpop.f32.mrf.mxu0
        %v622 = vadd.f32 %v560, %v621
        %v623 = vpop.f32.mrf.mxu0
        %v624 = vadd.f32 %v564, %v623
        %v625 = vpop.f32.mrf.mxu0
        %v626 = vadd.f32 %v560, %v625
        %v627 = vpop.f32.mrf.mxu0
        %v628 = vadd.f32 %v564, %v627
        %629 = vmatprep.mubr.bf16.mxu0 %v254
        %630 = vmatmul.mubr.bf16.gmra.mxu0 %v253
        %v631 = vpop.f32.mrf.mxu0
        %v632 = vadd.f32 %v560, %v631
        %v633 = vpop.f32.mrf.mxu0
        %v634 = vadd.f32 %v564, %v633
        %v635 = vpop.f32.mrf.mxu0
        %v636 = vadd.f32 %v560, %v635
        %v637 = vpop.f32.mrf.mxu0
        %v638 = vadd.f32 %v564, %v637
        %639 = vmatprep.mubr.bf16.mxu0 %v256
        %640 = vmatmul.mubr.bf16.gmra.mxu0 %v255
        %v641 = vpop.f32.mrf.mxu0
        %v642 = vadd.f32 %v560, %v641
        %v643 = vpop.f32.mrf.mxu0
        %v644 = vadd.f32 %v564, %v643
        %v645 = vpop.f32.mrf.mxu0
        %v646 = vadd.f32 %v560, %v645
        %v647 = vpop.f32.mrf.mxu0
        %v648 = vadd.f32 %v564, %v647
        %649 = vmatprep.mubr.bf16.mxu0 %v258
        %650 = vmatmul.mubr.bf16.gmra.mxu0 %v257
        %v651 = vpop.f32.mrf.mxu0
        %v652 = vadd.f32 %v560, %v651
        %v653 = vpop.f32.mrf.mxu0
        %v654 = vadd.f32 %v564, %v653
        %v655 = vpop.f32.mrf.mxu0
        %v656 = vadd.f32 %v560, %v655
        %v657 = vpop.f32.mrf.mxu0
        %v658 = vadd.f32 %v564, %v657
        %659 = vmatprep.mubr.bf16.mxu0 %v260
        %660 = vmatmul.mubr.bf16.gmra.mxu0 %v259
        %v661 = vpop.f32.mrf.mxu0
        %v662 = vadd.f32 %v560, %v661
        %v663 = vpop.f32.mrf.mxu0
        %v664 = vadd.f32 %v564, %v663
        %v665 = vpop.f32.mrf.mxu0
        %v666 = vadd.f32 %v560, %v665
        %v667 = vpop.f32.mrf.mxu0
        %v668 = vadd.f32 %v564, %v667
        %669 = vmatprep.mubr.bf16.mxu0 %v262
        %670 = vmatmul.mubr.bf16.gmra.mxu0 %v261
        %v671 = vpop.f32.mrf.mxu0
        %v672 = vadd.f32 %v560, %v671
        %v673 = vpop.f32.mrf.mxu0
        %v674 = vadd.f32 %v564, %v673
        %v675 = vpop.f32.mrf.mxu0
        %v676 = vadd.f32 %v560, %v675
        %v677 = vpop.f32.mrf.mxu0
        %v678 = vadd.f32 %v564, %v677
        %679 = vmatprep.mubr.bf16.mxu0 %v264
        %680 = vmatmul.mubr.bf16.gmra.mxu0 %v263
        %v681 = vpop.f32.mrf.mxu0
        %v682 = vadd.f32 %v560, %v681
        %v683 = vpop.f32.mrf.mxu0
        %v684 = vadd.f32 %v564, %v683
        %v685 = vpop.f32.mrf.mxu0
        %v686 = vadd.f32 %v560, %v685
        %v687 = vpop.f32.mrf.mxu0
        %v688 = vadd.f32 %v564, %v687
        %689 = vmatprep.mubr.bf16.mxu0 %v266
        %690 = vmatmul.mubr.bf16.gmra.mxu0 %v265
        %v691 = vpop.f32.mrf.mxu0
        %v692 = vadd.f32 %v560, %v691
        %v693 = vpop.f32.mrf.mxu0
        %v694 = vadd.f32 %v564, %v693
        %v695 = vpop.f32.mrf.mxu0
        %v696 = vadd.f32 %v560, %v695
        %v697 = vpop.f32.mrf.mxu0
        %v698 = vadd.f32 %v564, %v697
        %699 = vdwg.mxu0
        %700 = vmatprep.subr.bf16.mxu0 %v504
        %701 = vmatpush1.bf16.msra.mxu0 %v503
        %702 = vmatprep.subr.bf16.mxu0 %v498
        %703 = vmatpush1.bf16.msra.mxu0 %v497
        %704 = vmatprep.subr.bf16.mxu0 %v492
        %705 = vmatpush1.bf16.msra.mxu0 %v491
        %706 = vmatprep.subr.bf16.mxu0 %v486
        %707 = vmatpush1.bf16.msra.mxu0 %v485
        %708 = vmatprep.subr.bf16.mxu0 %v480
        %709 = vmatpush1.bf16.msra.mxu0 %v479
        %710 = vmatprep.subr.bf16.mxu0 %v474
        %711 = vmatpush1.bf16.msra.mxu0 %v473
        %712 = vmatprep.subr.bf16.mxu0 %v468
        %713 = vmatpush1.bf16.msra.mxu0 %v467
        %714 = vmatprep.subr.bf16.mxu0 %v462
        %715 = vmatpush1.bf16.msra.mxu0 %v461
        %716 = vmatprep.subr.bf16.mxu0 %v552
        %717 = vmatpush2.bf16.msra.mxu0 %v551
        %718 = vmatprep.subr.bf16.mxu0 %v546
        %719 = vmatpush2.bf16.msra.mxu0 %v545
        %720 = vmatprep.subr.bf16.mxu0 %v540
        %721 = vmatpush2.bf16.msra.mxu0 %v539
        %722 = vmatprep.subr.bf16.mxu0 %v534
        %723 = vmatpush2.bf16.msra.mxu0 %v533
        %724 = vmatprep.subr.bf16.mxu0 %v528
        %725 = vmatpush2.bf16.msra.mxu0 %v527
        %726 = vmatprep.subr.bf16.mxu0 %v522
        %727 = vmatpush2.bf16.msra.mxu0 %v521
        %728 = vmatprep.subr.bf16.mxu0 %v516
        %729 = vmatpush2.bf16.msra.mxu0 %v515
        %730 = vmatprep.subr.bf16.mxu0 %v510
        %731 = vmatpush2.bf16.msra.mxu0 %v509
        %732 = vmatprep.mubr.bf16.mxu0 %v252
        %733 = vmatmul.mubr.bf16.gmra.mxu0 %v251
        %v734 = vpop.f32.mrf.mxu0
        %v735 = vadd.f32 %v568, %v734
        %v736 = vpop.f32.mrf.mxu0
        %v737 = vadd.f32 %v572, %v736
        %v738 = vpop.f32.mrf.mxu0
        %v739 = vadd.f32 %v568, %v738
        %v740 = vpop.f32.mrf.mxu0
        %v741 = vadd.f32 %v572, %v740
        %742 = vmatprep.mubr.bf16.mxu0 %v254
        %743 = vmatmul.mubr.bf16.gmra.mxu0 %v253
        %v744 = vpop.f32.mrf.mxu0
        %v745 = vadd.f32 %v568, %v744
        %v746 = vpop.f32.mrf.mxu0
        %v747 = vadd.f32 %v572, %v746
        %v748 = vpop.f32.mrf.mxu0
        %v749 = vadd.f32 %v568, %v748
        %v750 = vpop.f32.mrf.mxu0
        %v751 = vadd.f32 %v572, %v750
        %752 = vmatprep.mubr.bf16.mxu0 %v256
        %753 = vmatmul.mubr.bf16.gmra.mxu0 %v255
        %v754 = vpop.f32.mrf.mxu0
        %v755 = vadd.f32 %v568, %v754
        %v756 = vpop.f32.mrf.mxu0
        %v757 = vadd.f32 %v572, %v756
        %v758 = vpop.f32.mrf.mxu0
        %v759 = vadd.f32 %v568, %v758
        %v760 = vpop.f32.mrf.mxu0
        %v761 = vadd.f32 %v572, %v760
        %762 = vmatprep.mubr.bf16.mxu0 %v258
        %763 = vmatmul.mubr.bf16.gmra.mxu0 %v257
        %v764 = vpop.f32.mrf.mxu0
        %v765 = vadd.f32 %v568, %v764
        %v766 = vpop.f32.mrf.mxu0
        %v767 = vadd.f32 %v572, %v766
        %v768 = vpop.f32.mrf.mxu0
        %v769 = vadd.f32 %v568, %v768
        %v770 = vpop.f32.mrf.mxu0
        %v771 = vadd.f32 %v572, %v770
        %772 = vmatprep.mubr.bf16.mxu0 %v260
        %773 = vmatmul.mubr.bf16.gmra.mxu0 %v259
        %v774 = vpop.f32.mrf.mxu0
        %v775 = vadd.f32 %v568, %v774
        %v776 = vpop.f32.mrf.mxu0
        %v777 = vadd.f32 %v572, %v776
        %v778 = vpop.f32.mrf.mxu0
        %v779 = vadd.f32 %v568, %v778
        %v780 = vpop.f32.mrf.mxu0
        %v781 = vadd.f32 %v572, %v780
        %782 = vmatprep.mubr.bf16.mxu0 %v262
        %783 = vmatmul.mubr.bf16.gmra.mxu0 %v261
        %v784 = vpop.f32.mrf.mxu0
        %v785 = vadd.f32 %v568, %v784
        %v786 = vpop.f32.mrf.mxu0
        %v787 = vadd.f32 %v572, %v786
        %v788 = vpop.f32.mrf.mxu0
        %v789 = vadd.f32 %v568, %v788
        %v790 = vpop.f32.mrf.mxu0
        %v791 = vadd.f32 %v572, %v790
        %792 = vmatprep.mubr.bf16.mxu0 %v264
        %793 = vmatmul.mubr.bf16.gmra.mxu0 %v263
        %v794 = vpop.f32.mrf.mxu0
        %v795 = vadd.f32 %v568, %v794
        %v796 = vpop.f32.mrf.mxu0
        %v797 = vadd.f32 %v572, %v796
        %v798 = vpop.f32.mrf.mxu0
        %v799 = vadd.f32 %v568, %v798
        %v800 = vpop.f32.mrf.mxu0
        %v801 = vadd.f32 %v572, %v800
        %802 = vmatprep.mubr.bf16.mxu0 %v266
        %803 = vmatmul.mubr.bf16.gmra.mxu0 %v265
        %v804 = vpop.f32.mrf.mxu0
        %v805 = vadd.f32 %v568, %v804
        %v806 = vpop.f32.mrf.mxu0
        %v807 = vadd.f32 %v572, %v806
        %v808 = vpop.f32.mrf.mxu0
        %v809 = vadd.f32 %v568, %v808
        %v810 = vpop.f32.mrf.mxu0
        %v811 = vadd.f32 %v572, %v810
        %812 = vdwg.mxu0
        %813 = vmatprep.subr.bf16.mxu0 %v506
        %814 = vmatpush1.bf16.msra.mxu0 %v505
        %815 = vmatprep.subr.bf16.mxu0 %v500
        %816 = vmatpush1.bf16.msra.mxu0 %v499
        %817 = vmatprep.subr.bf16.mxu0 %v494
        %818 = vmatpush1.bf16.msra.mxu0 %v493
        %819 = vmatprep.subr.bf16.mxu0 %v488
        %820 = vmatpush1.bf16.msra.mxu0 %v487
        %821 = vmatprep.subr.bf16.mxu0 %v482
        %822 = vmatpush1.bf16.msra.mxu0 %v481
        %823 = vmatprep.subr.bf16.mxu0 %v476
        %824 = vmatpush1.bf16.msra.mxu0 %v475
        %825 = vmatprep.subr.bf16.mxu0 %v470
        %826 = vmatpush1.bf16.msra.mxu0 %v469
        %827 = vmatprep.subr.bf16.mxu0 %v464
        %828 = vmatpush1.bf16.msra.mxu0 %v463
        %829 = vmatprep.subr.bf16.mxu0 %v554
        %830 = vmatpush2.bf16.msra.mxu0 %v553
        %831 = vmatprep.subr.bf16.mxu0 %v548
        %832 = vmatpush2.bf16.msra.mxu0 %v547
        %833 = vmatprep.subr.bf16.mxu0 %v542
        %834 = vmatpush2.bf16.msra.mxu0 %v541
        %835 = vmatprep.subr.bf16.mxu0 %v536
        %836 = vmatpush2.bf16.msra.mxu0 %v535
        %837 = vmatprep.subr.bf16.mxu0 %v530
        %838 = vmatpush2.bf16.msra.mxu0 %v529
        %839 = vmatprep.subr.bf16.mxu0 %v524
        %840 = vmatpush2.bf16.msra.mxu0 %v523
        %841 = vmatprep.subr.bf16.mxu0 %v518
        %842 = vmatpush2.bf16.msra.mxu0 %v517
        %843 = vmatprep.subr.bf16.mxu0 %v512
        %844 = vmatpush2.bf16.msra.mxu0 %v511
        %845 = vmatprep.mubr.bf16.mxu0 %v252
        %846 = vmatmul.mubr.bf16.gmra.mxu0 %v251
        %v847 = vpop.f32.mrf.mxu0
        %v848 = vadd.f32 %v576, %v847
        %v849 = vpop.f32.mrf.mxu0
        %v850 = vadd.f32 %v580, %v849
        %v851 = vpop.f32.mrf.mxu0
        %v852 = vadd.f32 %v576, %v851
        %v853 = vpop.f32.mrf.mxu0
        %v854 = vadd.f32 %v580, %v853
        %855 = vmatprep.mubr.bf16.mxu0 %v254
        %856 = vmatmul.mubr.bf16.gmra.mxu0 %v253
        %v857 = vpop.f32.mrf.mxu0
        %v858 = vadd.f32 %v576, %v857
        %v859 = vpop.f32.mrf.mxu0
        %v860 = vadd.f32 %v580, %v859
        %v861 = vpop.f32.mrf.mxu0
        %v862 = vadd.f32 %v576, %v861
        %v863 = vpop.f32.mrf.mxu0
        %v864 = vadd.f32 %v580, %v863
        %865 = vmatprep.mubr.bf16.mxu0 %v256
        %866 = vmatmul.mubr.bf16.gmra.mxu0 %v255
        %v867 = vpop.f32.mrf.mxu0
        %v868 = vadd.f32 %v576, %v867
        %v869 = vpop.f32.mrf.mxu0
        %v870 = vadd.f32 %v580, %v869
        %v871 = vpop.f32.mrf.mxu0
        %v872 = vadd.f32 %v576, %v871
        %v873 = vpop.f32.mrf.mxu0
        %v874 = vadd.f32 %v580, %v873
        %875 = vmatprep.mubr.bf16.mxu0 %v258
        %876 = vmatmul.mubr.bf16.gmra.mxu0 %v257
        %v877 = vpop.f32.mrf.mxu0
        %v878 = vadd.f32 %v576, %v877
        %v879 = vpop.f32.mrf.mxu0
        %v880 = vadd.f32 %v580, %v879
        %v881 = vpop.f32.mrf.mxu0
        %v882 = vadd.f32 %v576, %v881
        %v883 = vpop.f32.mrf.mxu0
        %v884 = vadd.f32 %v580, %v883
        %885 = vmatprep.mubr.bf16.mxu0 %v260
        %886 = vmatmul.mubr.bf16.gmra.mxu0 %v259
        %v887 = vpop.f32.mrf.mxu0
        %v888 = vadd.f32 %v576, %v887
        %v889 = vpop.f32.mrf.mxu0
        %v890 = vadd.f32 %v580, %v889
        %v891 = vpop.f32.mrf.mxu0
        %v892 = vadd.f32 %v576, %v891
        %v893 = vpop.f32.mrf.mxu0
        %v894 = vadd.f32 %v580, %v893
        %895 = vmatprep.mubr.bf16.mxu0 %v262
        %896 = vmatmul.mubr.bf16.gmra.mxu0 %v261
        %v897 = vpop.f32.mrf.mxu0
        %v898 = vadd.f32 %v576, %v897
        %v899 = vpop.f32.mrf.mxu0
        %v900 = vadd.f32 %v580, %v899
        %v901 = vpop.f32.mrf.mxu0
        %v902 = vadd.f32 %v576, %v901
        %v903 = vpop.f32.mrf.mxu0
        %v904 = vadd.f32 %v580, %v903
        %905 = vmatprep.mubr.bf16.mxu0 %v264
        %906 = vmatmul.mubr.bf16.gmra.mxu0 %v263
        %v907 = vpop.f32.mrf.mxu0
        %v908 = vadd.f32 %v576, %v907
        %v909 = vpop.f32.mrf.mxu0
        %v910 = vadd.f32 %v580, %v909
        %v911 = vpop.f32.mrf.mxu0
        %v912 = vadd.f32 %v576, %v911
        %v913 = vpop.f32.mrf.mxu0
        %v914 = vadd.f32 %v580, %v913
        %915 = vmatprep.mubr.bf16.mxu0 %v266
        %916 = vmatmul.mubr.bf16.gmra.mxu0 %v265
        %v917 = vpop.f32.mrf.mxu0
        %v918 = vadd.f32 %v576, %v917
        %v919 = vpop.f32.mrf.mxu0
        %v920 = vadd.f32 %v580, %v919
        %v921 = vpop.f32.mrf.mxu0
        %v922 = vadd.f32 %v576, %v921
        %v923 = vpop.f32.mrf.mxu0
        %v924 = vadd.f32 %v580, %v923
        %925 = vdwg.mxu0
        %v926 = vpack.c.bf16 %v626, %v622
        %v927 = vpack.c.bf16 %v628, %v624
        %v928 = vpack.c.bf16 %v739, %v735
        %v929 = vpack.c.bf16 %v741, %v737
        %v930 = vpack.c.bf16 %v852, %v848
        %v931 = vpack.c.bf16 %v854, %v850
        %v932 = vpack.c.bf16 %v636, %v632
        %v933 = vpack.c.bf16 %v638, %v634
        %v934 = vpack.c.bf16 %v749, %v745
        %v935 = vpack.c.bf16 %v751, %v747
        %v936 = vpack.c.bf16 %v862, %v858
        %v937 = vpack.c.bf16 %v864, %v860
        %v938 = vpack.c.bf16 %v646, %v642
        %v939 = vpack.c.bf16 %v648, %v644
        %v940 = vpack.c.bf16 %v759, %v755
        %v941 = vpack.c.bf16 %v761, %v757
        %v942 = vpack.c.bf16 %v872, %v868
        %v943 = vpack.c.bf16 %v874, %v870
        %v944 = vpack.c.bf16 %v656, %v652
        %v945 = vpack.c.bf16 %v658, %v654
        %v946 = vpack.c.bf16 %v769, %v765
        %v947 = vpack.c.bf16 %v771, %v767
        %v948 = vpack.c.bf16 %v882, %v878
        %v949 = vpack.c.bf16 %v884, %v880
        %v950 = vpack.c.bf16 %v666, %v662
        %v951 = vpack.c.bf16 %v668, %v664
        %v952 = vpack.c.bf16 %v779, %v775
        %v953 = vpack.c.bf16 %v781, %v777
        %v954 = vpack.c.bf16 %v892, %v888
        %v955 = vpack.c.bf16 %v894, %v890
        %v956 = vpack.c.bf16 %v676, %v672
        %v957 = vpack.c.bf16 %v678, %v674
        %v958 = vpack.c.bf16 %v789, %v785
        %v959 = vpack.c.bf16 %v791, %v787
        %v960 = vpack.c.bf16 %v902, %v898
        %v961 = vpack.c.bf16 %v904, %v900
        %v962 = vpack.c.bf16 %v686, %v682
        %v963 = vpack.c.bf16 %v688, %v684
        %v964 = vpack.c.bf16 %v799, %v795
        %v965 = vpack.c.bf16 %v801, %v797
        %v966 = vpack.c.bf16 %v912, %v908
        %v967 = vpack.c.bf16 %v914, %v910
        %v968 = vpack.c.bf16 %v696, %v692
        %v969 = vpack.c.bf16 %v698, %v694
        %v970 = vpack.c.bf16 %v809, %v805
        %v971 = vpack.c.bf16 %v811, %v807
        %v972 = vpack.c.bf16 %v922, %v918
        %v973 = vpack.c.bf16 %v924, %v920
        %v1022 = vunpack.c.l.b16 %v926
        %v1023 = vunpack.c.l.b16 %v927
        %v1024 = vunpack.c.l.b16 %v928
        %v1025 = vunpack.c.l.b16 %v929
        %v1026 = vunpack.c.l.b16 %v930
        %v1027 = vunpack.c.l.b16 %v931
        %v1028 = vunpack.c.h.b16 %v926
        %v1029 = vunpack.c.h.b16 %v927
        %v1030 = vunpack.c.h.b16 %v928
        %v1031 = vunpack.c.h.b16 %v929
        %v1032 = vunpack.c.h.b16 %v930
        %v1033 = vunpack.c.h.b16 %v931
        %v1034 = vunpack.c.l.b16 %v932
        %v1035 = vunpack.c.l.b16 %v933
        %v1036 = vunpack.c.l.b16 %v934
        %v1037 = vunpack.c.l.b16 %v935
        %v1038 = vunpack.c.l.b16 %v936
        %v1039 = vunpack.c.l.b16 %v937
        %v1040 = vunpack.c.h.b16 %v932
        %v1041 = vunpack.c.h.b16 %v933
        %v1042 = vunpack.c.h.b16 %v934
        %v1043 = vunpack.c.h.b16 %v935
        %v1044 = vunpack.c.h.b16 %v936
        %v1045 = vunpack.c.h.b16 %v937
        %v1046 = vunpack.c.l.b16 %v938
        %v1047 = vunpack.c.l.b16 %v939
        %v1048 = vunpack.c.l.b16 %v940
        %v1049 = vunpack.c.l.b16 %v941
        %v1050 = vunpack.c.l.b16 %v942
        %v1051 = vunpack.c.l.b16 %v943
        %v1052 = vunpack.c.h.b16 %v938
        %v1053 = vunpack.c.h.b16 %v939
        %v1054 = vunpack.c.h.b16 %v940
        %v1055 = vunpack.c.h.b16 %v941
        %v1056 = vunpack.c.h.b16 %v942
        %v1057 = vunpack.c.h.b16 %v943
        %v1058 = vunpack.c.l.b16 %v944
        %v1059 = vunpack.c.l.b16 %v945
        %v1060 = vunpack.c.l.b16 %v946
        %v1061 = vunpack.c.l.b16 %v947
        %v1062 = vunpack.c.l.b16 %v948
        %v1063 = vunpack.c.l.b16 %v949
        %v1064 = vunpack.c.h.b16 %v944
        %v1065 = vunpack.c.h.b16 %v945
        %v1066 = vunpack.c.h.b16 %v946
        %v1067 = vunpack.c.h.b16 %v947
        %v1068 = vunpack.c.h.b16 %v948
        %v1069 = vunpack.c.h.b16 %v949
        %v1070 = vunpack.c.l.b16 %v950
        %v1071 = vunpack.c.l.b16 %v951
        %v1072 = vunpack.c.l.b16 %v952
        %v1073 = vunpack.c.l.b16 %v953
        %v1074 = vunpack.c.l.b16 %v954
        %v1075 = vunpack.c.l.b16 %v955
        %v1076 = vunpack.c.h.b16 %v950
        %v1077 = vunpack.c.h.b16 %v951
        %v1078 = vunpack.c.h.b16 %v952
        %v1079 = vunpack.c.h.b16 %v953
        %v1080 = vunpack.c.h.b16 %v954
        %v1081 = vunpack.c.h.b16 %v955
        %v1082 = vunpack.c.l.b16 %v956
        %v1083 = vunpack.c.l.b16 %v957
        %v1084 = vunpack.c.l.b16 %v958
        %v1085 = vunpack.c.l.b16 %v959
        %v1086 = vunpack.c.l.b16 %v960
        %v1087 = vunpack.c.l.b16 %v961
        %v1088 = vunpack.c.h.b16 %v956
        %v1089 = vunpack.c.h.b16 %v957
        %v1090 = vunpack.c.h.b16 %v958
        %v1091 = vunpack.c.h.b16 %v959
        %v1092 = vunpack.c.h.b16 %v960
        %v1093 = vunpack.c.h.b16 %v961
        %v1094 = vunpack.c.l.b16 %v962
        %v1095 = vunpack.c.l.b16 %v963
        %v1096 = vunpack.c.l.b16 %v964
        %v1097 = vunpack.c.l.b16 %v965
        %v1098 = vunpack.c.l.b16 %v966
        %v1099 = vunpack.c.l.b16 %v967
        %v1100 = vunpack.c.h.b16 %v962
        %v1101 = vunpack.c.h.b16 %v963
        %v1102 = vunpack.c.h.b16 %v964
        %v1103 = vunpack.c.h.b16 %v965
        %v1104 = vunpack.c.h.b16 %v966
        %v1105 = vunpack.c.h.b16 %v967
        %v1106 = vunpack.c.l.b16 %v968
        %v1107 = vunpack.c.l.b16 %v969
        %v1108 = vunpack.c.l.b16 %v970
        %v1109 = vunpack.c.l.b16 %v971
        %v1110 = vunpack.c.l.b16 %v972
        %v1111 = vunpack.c.l.b16 %v973
        %v1112 = vunpack.c.h.b16 %v968
        %v1113 = vunpack.c.h.b16 %v969
        %v1114 = vunpack.c.h.b16 %v970
        %v1115 = vunpack.c.h.b16 %v971
        %v1116 = vunpack.c.h.b16 %v972
        %v1117 = vunpack.c.h.b16 %v973
        %v1118 = vpack.c.b16 %v1023, %v1022
        %v1119 = vpack.c.b16 %v1025, %v1024
        %v1120 = vpack.c.b16 %v1027, %v1026
        %v1121 = vpack.c.b16 %v1029, %v1028
        %v1122 = vpack.c.b16 %v1031, %v1030
        %v1123 = vpack.c.b16 %v1033, %v1032
        %v1124 = vpack.c.b16 %v1035, %v1034
        %v1125 = vpack.c.b16 %v1037, %v1036
        %v1126 = vpack.c.b16 %v1039, %v1038
        %v1127 = vpack.c.b16 %v1041, %v1040
        %v1128 = vpack.c.b16 %v1043, %v1042
        %v1129 = vpack.c.b16 %v1045, %v1044
        %v1130 = vpack.c.b16 %v1047, %v1046
        %v1131 = vpack.c.b16 %v1049, %v1048
        %v1132 = vpack.c.b16 %v1051, %v1050
        %v1133 = vpack.c.b16 %v1053, %v1052
        %v1134 = vpack.c.b16 %v1055, %v1054
        %v1135 = vpack.c.b16 %v1057, %v1056
        %v1136 = vpack.c.b16 %v1059, %v1058
        %v1137 = vpack.c.b16 %v1061, %v1060
        %v1138 = vpack.c.b16 %v1063, %v1062
        %v1139 = vpack.c.b16 %v1065, %v1064
        %v1140 = vpack.c.b16 %v1067, %v1066
        %v1141 = vpack.c.b16 %v1069, %v1068
        %v1142 = vpack.c.b16 %v1071, %v1070
        %v1143 = vpack.c.b16 %v1073, %v1072
        %v1144 = vpack.c.b16 %v1075, %v1074
        %v1145 = vpack.c.b16 %v1077, %v1076
        %v1146 = vpack.c.b16 %v1079, %v1078
        %v1147 = vpack.c.b16 %v1081, %v1080
        %v1148 = vpack.c.b16 %v1083, %v1082
        %v1149 = vpack.c.b16 %v1085, %v1084
        %v1150 = vpack.c.b16 %v1087, %v1086
        %v1151 = vpack.c.b16 %v1089, %v1088
        %v1152 = vpack.c.b16 %v1091, %v1090
        %v1153 = vpack.c.b16 %v1093, %v1092
        %v1154 = vpack.c.b16 %v1095, %v1094
        %v1155 = vpack.c.b16 %v1097, %v1096
        %v1156 = vpack.c.b16 %v1099, %v1098
        %v1157 = vpack.c.b16 %v1101, %v1100
        %v1158 = vpack.c.b16 %v1103, %v1102
        %v1159 = vpack.c.b16 %v1105, %v1104
        %v1160 = vpack.c.b16 %v1107, %v1106
        %v1161 = vpack.c.b16 %v1109, %v1108
        %v1162 = vpack.c.b16 %v1111, %v1110
        %v1163 = vpack.c.b16 %v1113, %v1112
        %v1164 = vpack.c.b16 %v1115, %v1114
        %v1165 = vpack.c.b16 %v1117, %v1116
        %1214 = vst [vmem:[%s216] sm:$0xff] %v1118
        %1215 = vst [vmem:[%s216 + $0x8] sm:$0xff] %v1119
        %1216 = vst [vmem:[%s216 + $0x10] sm:$0xff] %v1120
        %1217 = vst [vmem:[%s216 + $0x18] sm:$0xff] %v1121
        %1218 = vst [vmem:[%s216 + $0x20] sm:$0xff] %v1122
        %1219 = vst [vmem:[%s216 + $0x28] sm:$0xff] %v1123
        %1220 = vst [vmem:[%s216 + $0x30] sm:$0xff] %v1124
        %1221 = vst [vmem:[%s216 + $0x38] sm:$0xff] %v1125
        %1222 = vst [vmem:[%s216 + $0x40] sm:$0xff] %v1126
        %1223 = vst [vmem:[%s216 + $0x48] sm:$0xff] %v1127
        %1224 = vst [vmem:[%s216 + $0x50] sm:$0xff] %v1128
        %1225 = vst [vmem:[%s216 + $0x58] sm:$0xff] %v1129
        %1226 = vst [vmem:[%s216 + $0x60] sm:$0xff] %v1130
        %1227 = vst [vmem:[%s216 + $0x68] sm:$0xff] %v1131
        %1228 = vst [vmem:[%s216 + $0x70] sm:$0xff] %v1132
        %1229 = vst [vmem:[%s216 + $0x78] sm:$0xff] %v1133
        %1230 = vst [vmem:[%s216 + $0x80] sm:$0xff] %v1134
        %1231 = vst [vmem:[%s216 + $0x88] sm:$0xff] %v1135
        %1232 = vst [vmem:[%s216 + $0x90] sm:$0xff] %v1136
        %1233 = vst [vmem:[%s216 + $0x98] sm:$0xff] %v1137
        %1234 = vst [vmem:[%s216 + $0xa0] sm:$0xff] %v1138
        %1235 = vst [vmem:[%s216 + $0xa8] sm:$0xff] %v1139
        %1236 = vst [vmem:[%s216 + $0xb0] sm:$0xff] %v1140
        %1237 = vst [vmem:[%s216 + $0xb8] sm:$0xff] %v1141
        %1238 = vst [vmem:[%s216 + $0xc0] sm:$0xff] %v1142
        %1239 = vst [vmem:[%s216 + $0xc8] sm:$0xff] %v1143
        %1240 = vst [vmem:[%s216 + $0xd0] sm:$0xff] %v1144
        %1241 = vst [vmem:[%s216 + $0xd8] sm:$0xff] %v1145
        %1242 = vst [vmem:[%s216 + $0xe0] sm:$0xff] %v1146
        %1243 = vst [vmem:[%s216 + $0xe8] sm:$0xff] %v1147
        %1244 = vst [vmem:[%s216 + $0xf0] sm:$0xff] %v1148
        %1245 = vst [vmem:[%s216 + $0xf8] sm:$0xff] %v1149
        %1246 = vst [vmem:[%s216 + $0x100] sm:$0xff] %v1150
        %1247 = vst [vmem:[%s216 + $0x108] sm:$0xff] %v1151
        %1248 = vst [vmem:[%s216 + $0x110] sm:$0xff] %v1152
        %1249 = vst [vmem:[%s216 + $0x118] sm:$0xff] %v1153
        %1250 = vst [vmem:[%s216 + $0x120] sm:$0xff] %v1154
        %1251 = vst [vmem:[%s216 + $0x128] sm:$0xff] %v1155
        %1252 = vst [vmem:[%s216 + $0x130] sm:$0xff] %v1156
        %1253 = vst [vmem:[%s216 + $0x138] sm:$0xff] %v1157
        %1254 = vst [vmem:[%s216 + $0x140] sm:$0xff] %v1158
        %1255 = vst [vmem:[%s216 + $0x148] sm:$0xff] %v1159
        %1256 = vst [vmem:[%s216 + $0x150] sm:$0xff] %v1160
        %1257 = vst [vmem:[%s216 + $0x158] sm:$0xff] %v1161
        %1258 = vst [vmem:[%s216 + $0x160] sm:$0xff] %v1162
        %1259 = vst [vmem:[%s216 + $0x168] sm:$0xff] %v1163
        %1260 = vst [vmem:[%s216 + $0x170] sm:$0xff] %v1164
        %1261 = vst [vmem:[%s216 + $0x178] sm:$0xff] %v1165
        %s1262 = sand.u32 %s97, 1
        %s1263 = scalar_lea.sflag [#allocation4], %s1262
        %s1264 = sand.u32 %s97, 1
        %s1265 = smul.addr %s1264, 384
        %s1266 = scalar_lea.vmem [#allocation8], %s1265
        // Predicated region
        $region45: #{tpu_custom_call.1} parent=31 // pred_check
          %p1267 = pneg %p107
        $region46: #{tpu_custom_call.1} parent=31 // pred_check_branch
          %1269 = sbr.rel (%p1267) target = $region48
        $region47: #{tpu_custom_call.1} parent=31 // pred_region
          %s1270 = smul.u32 16, %s21
          %s1272 = ssub.s32 6144, 6144
          %1273 = vsyncadd %s1263, %s1272
          %s1274 = smul.addr %s1270, 6
          %s1275 = smul.addr %s1274, 64
          %s1276 = scalar_lea.hbm %s3, %s1275
          %s1277 = sshll.u32 %s1266, 4
          %s1278 = int_to_ptr.vmem [resolvable:$true] %s1277
          %1283 = dma.vmem_to_hbm [thread:$0]  %s1278, 6144, %s1276, %s1263, 384, 384, 24
        $region48: #{tpu_custom_call.1} parent=31 // pred_fallthru
          _
      $region32: #{tpu_custom_call.1} parent=5 // pred_fallthru
        _
      %p1284 = scmp.le.s32.totalorder 2, %s16
      // Predicated region
      $region49: #{tpu_custom_call.1} parent=5 // pred_check
        %p1285 = pneg %p1284
      $region50: #{tpu_custom_call.1} parent=5 // pred_check_branch
        %1287 = sbr.rel (%p1285) target = $region52
      $region51: #{tpu_custom_call.1} parent=5 // pred_region
        %s1288 = ssub.s32 %s16, 2
        // Predicated region
        $region53: #{tpu_custom_call.1} parent=51 // pred_check
          %p1289 = pneg %p113
        $region54: #{tpu_custom_call.1} parent=51 // pred_check_branch
          %1291 = sbr.rel (%p1289) target = $region56
        $region55: #{tpu_custom_call.1} parent=51 // pred_region
          %s1292 = sand.u32 %s98, 1
          %s1293 = scalar_lea.sflag [#allocation4], %s1292
          %s1294 = sand.u32 %s98, 1
          %s1295 = smul.addr %s1294, 384
          %s1296 = scalar_lea.vmem [#allocation8], %s1295
          %1297 = dma.done %s1293, 6144
        $region56: #{tpu_custom_call.1} parent=51 // pred_fallthru
          _
      $region52: #{tpu_custom_call.1} parent=5 // pred_fallthru
        _
    $region6: #{tpu_custom_call.1} parent=1 // loop_footer
      %s20 = sadd.s32 1, %s16
    $region7: #{tpu_custom_call.1} parent=1 // loop_footer_branch
      %15 = sbr.rel target = $region3
    $region8: #{tpu_custom_call.1} parent=1 // loop_exit
      _
    %1298 = vsyncpa [#allocation3], 1
    %s1299 = scalar_lea.sflag [#allocation3], 1
    %1300 = vsyncpa %s1299, 1
    %1301 = vsyncpa [#allocation6], 1
    %1302 = vsyncpa [#allocation4], 1
    %s1303 = scalar_lea.sflag [#allocation4], 1
    %1304 = vsyncpa %s1303, 1

</llo_original>
